<compile_context>
chip_gen: v5e
topology: v5e:2x2
jax: 0.10.0
libtpu: 0.0.40
codegen_flags: <defaults>
</compile_context>

<pallas_src>
import numpy as np
import jax
import jax.numpy as jnp
from jax import lax
from jax.experimental import pallas as pl
from jax.experimental.pallas import tpu as pltpu

WINDOW_SIZE = 11
SIGMA = 1.5
C1 = 0.01 ** 2
C2 = 0.03 ** 2
MATMUL_DTYPE = jnp.bfloat16          # MXU operand dtype for the mu (1st-moment) path
_BLOCK_BYTES_TARGET = 512 * 1024     # per-array per-step input block (v7x 64MiB-safe)


def _gaussian_1d(window_size: int, sigma: float) -> np.ndarray:
    xs = np.arange(window_size, dtype=np.float64) - window_size // 2
    g = np.exp(-(xs ** 2) / (2.0 * sigma ** 2))
    return (g / g.sum()).astype(np.float32)


def _toeplitz_blur_matrices(H: int, W: int) -> tuple[np.ndarray, np.ndarray]:
    """Toeplitz matrices so that A @ x @ B == 'same'-zero-padded Gaussian blur."""
    g = _gaussian_1d(WINDOW_SIZE, SIGMA)
    pad = WINDOW_SIZE // 2
    A = np.zeros((H, H), dtype=np.float32)   # height blur (left multiply)
    for i in range(H):
        for j in range(H):
            k = j - i + pad
            if 0 <= k < WINDOW_SIZE:
                A[i, j] = g[k]
    B = np.zeros((W, W), dtype=np.float32)   # width blur (right multiply)
    for i in range(W):
        for j in range(W):
            k = i - j + pad
            if 0 <= k < WINDOW_SIZE:
                B[i, j] = g[k]
    return A, B


def _choose_lane_packing(num_planes: int, W: int) -> int:
    """Planes packed side-by-side within one 128-lane chunk (PW = P*W)."""
    if W % 128 == 0:
        return 1
    if 128 % W == 0:
        p = 128 // W                 # power of two
        while p > 1:
            if num_planes % p == 0:
                return p
            p //= 2
    return 1


def _choose_group_batch(G: int, H: int, PW: int) -> int:
    """Largest divisor Gb of G with H*Gb*PW*4 <= target bytes.

    Batches Gb plane-groups per grid step: amortizes the ~0.35us/step overhead,
    issues bandwidth-efficient DMAs, and enlarges the matmuls toward the
    256-wide v6e/v7x MXU, while keeping ~20-30x of one input block of live f32
    intermediates comfortably inside the 32 MiB scoped VMEM limit (safe for
    v7x's 64 MiB physical VMEM).
    """
    best = 1
    for gb in range(1, G + 1):
        if G % gb:
            continue
        if H * gb * PW * 4 <= _BLOCK_BYTES_TARGET:
            best = gb
        else:
            break
    return best


def _grid_invariant_spec(block_shape):
    """BlockSpec for a grid-invariant operand; single-buffered when supported."""
    try:
        return pl.BlockSpec(block_shape, lambda c, j: (0, 0),
                            pipeline_mode=pl.Buffered(1))
    except TypeError:   # older BlockSpec without pipeline_mode
        return pl.BlockSpec(block_shape, lambda c, j: (0, 0))


def _make_dssim_kernel(H, PW, Gb, n_blocks, steps_per_core, needs_guard):
    rows = Gb * H          # sublane extent of each blurred quantity

    def fold_partial(m):
        # Reduce an (rows, PW) f32 SSIM map to (8, 128) lane-aligned partial
        # sums with cheap vreg adds; the cross-lane reduce happens once in the
        # wrapper epilogue.  Fast path needs PW%128==0 and rows%8==0 (true for
        # all packed configurations; fallback kept for odd shapes).
        if PW % 128 == 0 and rows % 8 == 0:
            r = m
            if PW > 128:
                r = r.reshape(rows, PW // 128, 128).sum(axis=1)
            if rows > 8:
                r = r.reshape(rows // 8, 8, 128).sum(axis=0)
            return r
        s = jnp.sum(m)
        rr = lax.broadcasted_iota(jnp.int32, (8, 128), 0)
        cc = lax.broadcasted_iota(jnp.int32, (8, 128), 1)
        return jnp.where((rr == 0) & (cc == 0), s, 0.0)

    def kernel(a_ref, b_ref, x_ref, y_ref, out_ref):
        j = pl.program_id(1)

        @pl.when(j == 0)
        def _init():
            out_ref[...] = jnp.zeros_like(out_ref)

        def accumulate():
            A32 = a_ref[...]                       # (H, H)    f32 (invariant)
            Bd32 = b_ref[...]                      # (PW, PW)  f32 block-diag
            A16 = A32.astype(MATMUL_DTYPE)
            Bd16 = Bd32.astype(MATMUL_DTYPE)
            # Elementwise math stays f32 (v5e has no bf16 VPU/EUP path).
            x = x_ref[0].astype(jnp.float32)       # (H, Gb*PW)
            y = y_ref[0].astype(jnp.float32)

            # --- Height blur.  mu path on bf16 MXU; second moments in f32 to
            # avoid catastrophic cancellation in sigma = E[x^2] - mu^2.
            mu_stack = jnp.concatenate([x, y], axis=1)               # (H, 2*Gb*PW)
            t_mu = jnp.dot(A16, mu_stack.astype(MATMUL_DTYPE),
                           preferred_element_type=jnp.float32)
            m2_stack = jnp.concatenate([x * x, y * y, x * y], axis=1)  # (H, 3*Gb*PW)
            t_m2 = jnp.dot(A32, m2_stack, preferred_element_type=jnp.float32)

            # --- Restack 128-aligned PW lane chunks onto sublanes, width blur.
            u_mu = jnp.concatenate(
                [t_mu[:, k * PW:(k + 1) * PW] for k in range(2 * Gb)], axis=0)
            u_m2 = jnp.concatenate(
                [t_m2[:, k * PW:(k + 1) * PW] for k in range(3 * Gb)], axis=0)
            r_mu = jnp.dot(u_mu.astype(MATMUL_DTYPE), Bd16,
                           preferred_element_type=jnp.float32)   # (2*rows, PW)
            r_m2 = jnp.dot(u_m2, Bd32,
                           preferred_element_type=jnp.float32)   # (3*rows, PW)

            mu1 = r_mu[0 * rows:1 * rows]
            mu2 = r_mu[1 * rows:2 * rows]
            e_x2 = r_m2[0 * rows:1 * rows]
            e_y2 = r_m2[1 * rows:2 * rows]
            e_xy = r_m2[2 * rows:3 * rows]

            mu1_sq = mu1 * mu1
            mu2_sq = mu2 * mu2
            mu12 = mu1 * mu2
            sigma1_sq = e_x2 - mu1_sq
            sigma2_sq = e_y2 - mu2_sq
            sigma12 = e_xy - mu12

            num = (2.0 * mu12 + C1) * (2.0 * sigma12 + C2)
            den = (mu1_sq + mu2_sq + C1) * (sigma1_sq + sigma2_sq + C2)
            # approx=True routes the divide through the (otherwise idle) EUP;
            # C1/C2 stabilizers keep the loss within ~1e-3 of the f32 reference.
            ssim_map = num * pl.reciprocal(den, approx=True)

            out_ref[...] += fold_partial(ssim_map)

        if needs_guard:
            # Ceil-split tail: the clamped index_map duplicates the last block;
            # just skip its contribution.
            block_idx = pl.program_id(0) * steps_per_core + j
            pl.when(block_idx < n_blocks)(accumulate)
        else:
            accumulate()

    return kernel


def dssim_loss(output: jax.Array, target: jax.Array) -> jax.Array:
    """output, target: (N, C, H, W).  Returns scalar DSSIM loss."""
    N, C, H, W = output.shape
    # Keep bf16 inputs in bf16 for the HBM->VMEM DMA (upcast inside the kernel);
    # anything exotic is normalized to f32.
    if output.dtype not in (jnp.float32, jnp.bfloat16):
        output = output.astype(jnp.float32)
    if target.dtype not in (jnp.float32, jnp.bfloat16):
        target = target.astype(jnp.float32)

    NP = N * C
    P = _choose_lane_packing(NP, W)          # planes per 128-lane chunk
    G = NP // P                              # plane-groups
    PW = P * W
    Gb = _choose_group_batch(G, H, PW)       # groups batched per grid step
    n_blocks = G // Gb
    LW = Gb * PW                             # lanes per kernel block

    # TODO(synk): this relayout costs one extra HBM round trip; fuse the packed
    # layout upstream or do the packing in-kernel with pl.ANY + per-plane DMAs.
    x = output.reshape(n_blocks, Gb * P, H, W)
    y = target.reshape(n_blocks, Gb * P, H, W)
    x = jnp.transpose(x, (0, 2, 1, 3)).reshape(n_blocks, H, LW)
    y = jnp.transpose(y, (0, 2, 1, 3)).reshape(n_blocks, H, LW)

    A_np, B_np = _toeplitz_blur_matrices(H, W)
    Bd_np = np.kron(np.eye(P, dtype=np.float32), B_np)   # block-diag width blur
    A = jnp.asarray(A_np, dtype=jnp.float32)
    Bd = jnp.asarray(Bd_np, dtype=jnp.float32)

    # Dual-TensorCore split (v7x): engage both cores whenever >=2 blocks exist;
    # odd counts use ceil-split + in-kernel guard.  Harmless on v5e/v6e.
    n_par = 2 if n_blocks >= 2 else 1
    steps = (n_blocks + n_par - 1) // n_par
    needs_guard = (n_par * steps != n_blocks)

    if needs_guard:
        def xy_map(c, j):
            return (jnp.minimum(c * steps + j, n_blocks - 1), 0, 0)
    else:
        def xy_map(c, j):
            return (c * steps + j, 0, 0)

    kernel = _make_dssim_kernel(H, PW, Gb, n_blocks, steps, needs_guard)

    partials = pl.pallas_call(
        kernel,
        out_shape=jax.ShapeDtypeStruct((n_par * 8, 128), jnp.float32),
        grid_spec=pltpu.PrefetchScalarGridSpec(
            num_scalar_prefetch=0,
            grid=(n_par, steps),
            in_specs=[
                _grid_invariant_spec((H, H)),       # A  (single-buffered)
                _grid_invariant_spec((PW, PW)),     # Bd (single-buffered)
                pl.BlockSpec((1, H, LW), xy_map),   # x block (Gb groups)
                pl.BlockSpec((1, H, LW), xy_map),   # y block
            ],
            out_specs=pl.BlockSpec((8, 128), lambda c, j: (c, 0)),
        ),
        compiler_params=pltpu.CompilerParams(
            dimension_semantics=("parallel", "arbitrary"),
            vmem_limit_bytes=32 * 1024 * 1024,
        ),
    )(A, Bd, x, y)

    # Epilogue (tiny, once): cross-lane reduce + (1 - mean) / 2.
    total_ssim = jnp.sum(partials)
    mean_ssim = total_ssim / float(N * C * H * W)
    return (1.0 - mean_ssim) * 0.5


if __name__ == "__main__":
    key = jax.random.PRNGKey(0)
    k1, k2 = jax.random.split(key)
    # Small image-like inputs in [0, 1] (data range 1.0), NCHW.
    out_img = jax.random.uniform(k1, (2, 4, 16, 16), dtype=jnp.float32)
    tgt_img = jax.random.uniform(k2, (2, 4, 16, 16), dtype=jnp.float32)

    loss = jax.jit(dssim_loss)(out_img, tgt_img)
    jax.block_until_ready(loss)
    print("KERNEL_OK")
</pallas_src>

<mosaic_0001>
module attributes {stable_mosaic.version = 11 : i64} {
  func.func @kernel(%arg0: i32, %arg1: i32, %arg2: memref<16x16xf32, #tpu.memory_space<vmem>>, %arg3: memref<128x128xf32, #tpu.memory_space<vmem>>, %arg4: memref<1x16x128xf32, #tpu.memory_space<vmem>>, %arg5: memref<1x16x128xf32, #tpu.memory_space<vmem>>, %arg6: memref<8x128xf32, #tpu.memory_space<vmem>>) attributes {dimension_semantics = [#tpu.dimension_semantics<parallel>, #tpu.dimension_semantics<arbitrary>], iteration_bounds = array<i64: 1, 1>, scalar_prefetch = 0 : i64, scratch_operands = 0 : i64, tpu.core_type = #tpu.core_type<tc>, window_params = [{pipeline_mode = #tpu.pipeline_mode<synchronous>, transform_indices = @transform_0, window_bounds = array<i64: 16, 16>}, {pipeline_mode = #tpu.pipeline_mode<synchronous>, transform_indices = @transform_1, window_bounds = array<i64: 128, 128>}, {transform_indices = @transform_2, window_bounds = array<i64: 1, 16, 128>}, {transform_indices = @transform_3, window_bounds = array<i64: 1, 16, 128>}, {transform_indices = @transform_4, window_bounds = array<i64: 8, 128>}]} {
    %c0_i32 = arith.constant 0 : i32
    %0 = arith.cmpi eq, %arg1, %c0_i32 : i32
    %1 = arith.extui %0 : i1 to i32
    %c0_i32_0 = arith.constant 0 : i32
    %2 = arith.cmpi ne, %1, %c0_i32_0 : i32
    scf.if %2 {
      %cst_24 = arith.constant 0.000000e+00 : f32
      %63 = vector.broadcast %cst_24 : f32 to vector<8x128xf32>
      %c0_25 = arith.constant 0 : index
      %c0_26 = arith.constant 0 : index
      %64 = vector.load %arg6[%c0_25, %c0_26] : memref<8x128xf32, #tpu.memory_space<vmem>>, vector<8x128xf32>
      tpu.vector_store %arg6[%c0_25, %c0_26], %63 {strides = array<i32>} : memref<8x128xf32, #tpu.memory_space<vmem>>, vector<8x128xf32>,
    } else {
    }
    %c0 = arith.constant 0 : index
    %c0_1 = arith.constant 0 : index
    %3 = vector.load %arg2[%c0, %c0_1] : memref<16x16xf32, #tpu.memory_space<vmem>>, vector<16x16xf32>
    %c0_2 = arith.constant 0 : index
    %c0_3 = arith.constant 0 : index
    %4 = vector.load %arg3[%c0_2, %c0_3] : memref<128x128xf32, #tpu.memory_space<vmem>>, vector<128x128xf32>
    %5 = arith.truncf %3 : vector<16x16xf32> to vector<16x16xbf16>
    %6 = arith.truncf %4 : vector<128x128xf32> to vector<128x128xbf16>
    %c0_4 = arith.constant 0 : index
    %c0_5 = arith.constant 0 : index
    %c0_6 = arith.constant 0 : index
    %7 = vector.load %arg4[%c0_4, %c0_5, %c0_6] : memref<1x16x128xf32, #tpu.memory_space<vmem>>, vector<1x16x128xf32>
    %8 = vector.shape_cast %7 : vector<1x16x128xf32> to vector<16x128xf32>
    %c0_7 = arith.constant 0 : index
    %c0_8 = arith.constant 0 : index
    %c0_9 = arith.constant 0 : index
    %9 = vector.load %arg5[%c0_7, %c0_8, %c0_9] : memref<1x16x128xf32, #tpu.memory_space<vmem>>, vector<1x16x128xf32>
    %10 = vector.shape_cast %9 : vector<1x16x128xf32> to vector<16x128xf32>
    %11 = tpu.concatenate %8, %10 in 1 : vector<16x128xf32>, vector<16x128xf32> -> vector<16x256xf32>
    %12 = arith.truncf %11 : vector<16x256xf32> to vector<16x256xbf16>
    %cst = arith.constant dense<0.000000e+00> : vector<16x256xf32>
    %13 = tpu.matmul %5, %12, %cst {dimension_numbers = #tpu.dot_dimension_numbers<[1], [0], [0], [1], [0, 0, 1, 1], [], []>} : vector<16x16xbf16>, vector<16x256xbf16>, vector<16x256xf32> -> vector<16x256xf32>
    %14 = arith.mulf %8, %8 : vector<16x128xf32>
    %15 = arith.mulf %10, %10 : vector<16x128xf32>
    %16 = arith.mulf %8, %10 : vector<16x128xf32>
    %17 = tpu.concatenate %14, %15, %16 in 1 : vector<16x128xf32>, vector<16x128xf32>, vector<16x128xf32> -> vector<16x384xf32>
    %cst_10 = arith.constant dense<0.000000e+00> : vector<16x384xf32>
    %18 = tpu.matmul %3, %17, %cst_10 {dimension_numbers = #tpu.dot_dimension_numbers<[1], [0], [0], [1], [0, 0, 1, 1], [], []>} : vector<16x16xf32>, vector<16x384xf32>, vector<16x384xf32> -> vector<16x384xf32>
    %19 = vector.extract_strided_slice %13 {offsets = [0, 0], sizes = [16, 128], strides = [1, 1]} : vector<16x256xf32> to vector<16x128xf32>
    %20 = vector.extract_strided_slice %13 {offsets = [0, 128], sizes = [16, 128], strides = [1, 1]} : vector<16x256xf32> to vector<16x128xf32>
    %21 = tpu.concatenate %19, %20 in 0 : vector<16x128xf32>, vector<16x128xf32> -> vector<32x128xf32>
    %22 = vector.extract_strided_slice %18 {offsets = [0, 0], sizes = [16, 128], strides = [1, 1]} : vector<16x384xf32> to vector<16x128xf32>
    %23 = vector.extract_strided_slice %18 {offsets = [0, 128], sizes = [16, 128], strides = [1, 1]} : vector<16x384xf32> to vector<16x128xf32>
    %24 = vector.extract_strided_slice %18 {offsets = [0, 256], sizes = [16, 128], strides = [1, 1]} : vector<16x384xf32> to vector<16x128xf32>
    %25 = tpu.concatenate %22, %23, %24 in 0 : vector<16x128xf32>, vector<16x128xf32>, vector<16x128xf32> -> vector<48x128xf32>
    %26 = arith.truncf %21 : vector<32x128xf32> to vector<32x128xbf16>
    %cst_11 = arith.constant dense<0.000000e+00> : vector<32x128xf32>
    %27 = tpu.matmul %26, %6, %cst_11 {dimension_numbers = #tpu.dot_dimension_numbers<[1], [0], [0], [1], [0, 0, 1, 1], [], []>} : vector<32x128xbf16>, vector<128x128xbf16>, vector<32x128xf32> -> vector<32x128xf32>
    %cst_12 = arith.constant dense<0.000000e+00> : vector<48x128xf32>
    %28 = tpu.matmul %25, %4, %cst_12 {dimension_numbers = #tpu.dot_dimension_numbers<[1], [0], [0], [1], [0, 0, 1, 1], [], []>} : vector<48x128xf32>, vector<128x128xf32>, vector<48x128xf32> -> vector<48x128xf32>
    %29 = vector.extract_strided_slice %27 {offsets = [0, 0], sizes = [16, 128], strides = [1, 1]} : vector<32x128xf32> to vector<16x128xf32>
    %30 = vector.extract_strided_slice %27 {offsets = [16, 0], sizes = [16, 128], strides = [1, 1]} : vector<32x128xf32> to vector<16x128xf32>
    %31 = vector.extract_strided_slice %28 {offsets = [0, 0], sizes = [16, 128], strides = [1, 1]} : vector<48x128xf32> to vector<16x128xf32>
    %32 = vector.extract_strided_slice %28 {offsets = [16, 0], sizes = [16, 128], strides = [1, 1]} : vector<48x128xf32> to vector<16x128xf32>
    %33 = vector.extract_strided_slice %28 {offsets = [32, 0], sizes = [16, 128], strides = [1, 1]} : vector<48x128xf32> to vector<16x128xf32>
    %34 = arith.mulf %29, %29 : vector<16x128xf32>
    %35 = arith.mulf %30, %30 : vector<16x128xf32>
    %36 = arith.mulf %29, %30 : vector<16x128xf32>
    %37 = arith.subf %31, %34 : vector<16x128xf32>
    %38 = arith.subf %32, %35 : vector<16x128xf32>
    %39 = arith.subf %33, %36 : vector<16x128xf32>
    %cst_13 = arith.constant 2.000000e+00 : f32
    %40 = vector.broadcast %cst_13 : f32 to vector<16x128xf32>
    %41 = arith.mulf %40, %36 : vector<16x128xf32>
    %cst_14 = arith.constant 9.99999974E-5 : f32
    %42 = vector.broadcast %cst_14 : f32 to vector<16x128xf32>
    %43 = arith.addf %41, %42 : vector<16x128xf32>
    %cst_15 = arith.constant 2.000000e+00 : f32
    %44 = vector.broadcast %cst_15 : f32 to vector<16x128xf32>
    %45 = arith.mulf %44, %39 : vector<16x128xf32>
    %cst_16 = arith.constant 8.99999984E-4 : f32
    %46 = vector.broadcast %cst_16 : f32 to vector<16x128xf32>
    %47 = arith.addf %45, %46 : vector<16x128xf32>
    %48 = arith.mulf %43, %47 : vector<16x128xf32>
    %49 = arith.addf %34, %35 : vector<16x128xf32>
    %cst_17 = arith.constant 9.99999974E-5 : f32
    %50 = vector.broadcast %cst_17 : f32 to vector<16x128xf32>
    %51 = arith.addf %49, %50 : vector<16x128xf32>
    %52 = arith.addf %37, %38 : vector<16x128xf32>
    %cst_18 = arith.constant 8.99999984E-4 : f32
    %53 = vector.broadcast %cst_18 : f32 to vector<16x128xf32>
    %54 = arith.addf %52, %53 : vector<16x128xf32>
    %55 = arith.mulf %51, %54 : vector<16x128xf32>
    %56 = tpu.reciprocal %55 {approx = true} : vector<16x128xf32> -> vector<16x128xf32>
    %57 = arith.mulf %48, %56 : vector<16x128xf32>
    %c0_19 = arith.constant 0 : index
    %c0_20 = arith.constant 0 : index
    %58 = vector.load %arg6[%c0_19, %c0_20] : memref<8x128xf32, #tpu.memory_space<vmem>>, vector<8x128xf32>
    %59 = vector.shape_cast %57 : vector<16x128xf32> to vector<2x8x128xf32>
    %cst_21 = arith.constant dense<0.000000e+00> : vector<8x128xf32>
    %60 = vector.multi_reduction <add>, %59, %cst_21 [0] : vector<2x8x128xf32> to vector<8x128xf32>
    %61 = arith.addf %58, %60 : vector<8x128xf32>
    %c0_22 = arith.constant 0 : index
    %c0_23 = arith.constant 0 : index
    %62 = vector.load %arg6[%c0_22, %c0_23] : memref<8x128xf32, #tpu.memory_space<vmem>>, vector<8x128xf32>
    tpu.vector_store %arg6[%c0_22, %c0_23], %61 {strides = array<i32>} : memref<8x128xf32, #tpu.memory_space<vmem>>, vector<8x128xf32>,
    return
  }
  func.func @transform_0(%arg0: i32, %arg1: i32) -> (i32, i32) {
    %c0_i32 = arith.constant 0 : i32
    %c0_i32_0 = arith.constant 0 : i32
    %c0_i32_1 = arith.constant 0 : i32
    return %c0_i32, %c0_i32_0 : i32, i32
  }
  func.func @transform_1(%arg0: i32, %arg1: i32) -> (i32, i32) {
    %c0_i32 = arith.constant 0 : i32
    %c0_i32_0 = arith.constant 0 : i32
    %c0_i32_1 = arith.constant 0 : i32
    return %c0_i32, %c0_i32_0 : i32, i32
  }
  func.func @transform_2(%arg0: i32, %arg1: i32) -> (i32, i32, i32) {
    %c1_i32 = arith.constant 1 : i32
    %0 = arith.muli %arg0, %c1_i32 : i32
    %1 = arith.addi %0, %arg1 : i32
    %c0_i32 = arith.constant 0 : i32
    %c0_i32_0 = arith.constant 0 : i32
    %c0_i32_1 = arith.constant 0 : i32
    return %1, %c0_i32, %c0_i32_0 : i32, i32, i32
  }
  func.func @transform_3(%arg0: i32, %arg1: i32) -> (i32, i32, i32) {
    %c1_i32 = arith.constant 1 : i32
    %0 = arith.muli %arg0, %c1_i32 : i32
    %1 = arith.addi %0, %arg1 : i32
    %c0_i32 = arith.constant 0 : i32
    %c0_i32_0 = arith.constant 0 : i32
    %c0_i32_1 = arith.constant 0 : i32
    return %1, %c0_i32, %c0_i32_0 : i32, i32, i32
  }
  func.func @transform_4(%arg0: i32, %arg1: i32) -> (i32, i32) {
    %c0_i32 = arith.constant 0 : i32
    %c0_i32_0 = arith.constant 0 : i32
    return %arg0, %c0_i32 : i32, i32
  }
}

</mosaic_0001>

<llo_original>
// kernel: dssim_loss.1
$region0: #{dssim_loss.1}
  #allocation0 [shape = 'u32[]', space=smem, size = 0x4, offset = 0x4, fixed_abs, tag = 'smem constant byte address 0x4 - core index']
  #allocation1 [shape = 'u32[72,128]{1,0:T(1,128)}', space=vmem, size = 0x9000, scoped, tag = 'internal scratch']
  %s0 = inlined_call_operand.vmem [shape: f32[16,16], index: 0, kind: input, shape index: {}]
  %s1 = inlined_call_operand.vmem [shape: f32[128,128], index: 1, kind: input, shape index: {}]
  %s2 = inlined_call_operand.vmem [shape: f32[1,16,128], index: 2, kind: input, shape index: {}]
  %s3 = inlined_call_operand.vmem [shape: f32[1,16,128], index: 3, kind: input, shape index: {}]
  %s4 = inlined_call_operand.vmem [shape: f32[8,128], index: 4, kind: output, shape index: {}]
  %s5 = sld [smem:[#allocation0]]
  $region30: #{dssim_loss.1} parent=0
    _
  %s7 = ssub.s32 1, %s5
  %s8 = scalar_select 0, %s7, %s5
  // Predicated region
  $region2: #{dssim_loss.1} parent=0 // pred_check
    _
  $region3: #{dssim_loss.1} parent=0 // pred_check_branch
    %10 = sbr.rel (0) target = $region5
  $region4: #{dssim_loss.1} parent=0 // pred_region
    _
  $region5: #{dssim_loss.1} parent=0 // pred_fallthru
    _
  // Predicated region
  $region6: #{dssim_loss.1} parent=0 // pred_check
    _
  $region7: #{dssim_loss.1} parent=0 // pred_check_branch
    %12 = sbr.rel (0) target = $region9
  $region8: #{dssim_loss.1} parent=0 // pred_region
    _
  $region9: #{dssim_loss.1} parent=0 // pred_fallthru
    _
  // Predicated region
  $region10: #{dssim_loss.1} parent=0 // pred_check
    _
  $region11: #{dssim_loss.1} parent=0 // pred_check_branch
    %14 = sbr.rel (0) target = $region13
  $region12: #{dssim_loss.1} parent=0 // pred_region
    %s15 = sadd.s32 0, 0
    %p16 = scmp.lt.s32.totalorder %s15, 0
    %s17 = scalar_select %p16, %s15, 0
    %s18 = smul.addr %s17, 2
    %s19 = smul.addr %s18, 8
    %s20 = scalar_lea.vmem %s2, %s19
    %s21 = sadd.s32 0, 0
  $region13: #{dssim_loss.1} parent=0 // pred_fallthru
    _
  // Predicated region
  $region14: #{dssim_loss.1} parent=0 // pred_check
    _
  $region15: #{dssim_loss.1} parent=0 // pred_check_branch
    %23 = sbr.rel (0) target = $region17
  $region16: #{dssim_loss.1} parent=0 // pred_region
    %s24 = sadd.s32 0, 0
    %p25 = scmp.lt.s32.totalorder %s24, 0
    %s26 = scalar_select %p25, %s24, 0
    %s27 = smul.addr %s26, 2
    %s28 = smul.addr %s27, 8
    %s29 = scalar_lea.vmem %s3, %s28
    %s30 = sadd.s32 0, 0
  $region17: #{dssim_loss.1} parent=0 // pred_fallthru
    _
  %s31 = sadd.s32 0, 0
  %p32 = scmp.lt.s32.totalorder %s31, 0
  %s33 = scalar_select %p32, %s31, 0
  %s34 = smul.addr %s33, 2
  %s35 = smul.addr %s34, 8
  %s36 = scalar_lea.vmem %s2, %s35
  %s37 = sadd.s32 0, 0
  %p38 = scmp.lt.s32.totalorder %s37, 0
  %s39 = scalar_select %p38, %s37, 0
  %s40 = smul.addr %s39, 2
  %s41 = smul.addr %s40, 8
  %s42 = scalar_lea.vmem %s3, %s41
  %s43 = sadd.s32 0, 0
  %p44 = scmp.lt.s32.totalorder %s43, 0
  %s45 = scalar_select %p44, %s43, 0
  %s46 = smul.addr %s45, 2
  %s47 = smul.addr %s46, 8
  %s48 = scalar_lea.vmem %s2, %s47
  %s49 = sadd.s32 0, 0
  %s50 = sadd.s32 0, 0
  %p51 = scmp.lt.s32.totalorder %s50, 0
  %s52 = scalar_select %p51, %s50, 0
  %s53 = smul.addr %s52, 2
  %s54 = smul.addr %s53, 8
  %s55 = scalar_lea.vmem %s3, %s54
  %s56 = sadd.s32 0, 0
  %p58 = scmp.eq.s32.totalorder 0, 0
  // Predicated region
  $region18: #{dssim_loss.1} parent=0 // pred_check
    %p59 = pneg %p58
  $region19: #{dssim_loss.1} parent=0 // pred_check_branch
    %61 = sbr.rel (%p59) target = $region21
  $region20: #{dssim_loss.1} parent=0 // pred_region
    %62 = vst [vmem:[%s4] sm:$0xff] 0.0
  $region21: #{dssim_loss.1} parent=0 // pred_fallthru
    _
  %v63 = vld [vmem:[%s0] sm:$0xff]
  %v64 = vld [vmem:[%s0 + $0x8] sm:$0xff]
  %v65 = vld [vmem:[%s1] sm:$0xff]
  %v66 = vld [vmem:[%s1 + $0x8] sm:$0xff]
  %v67 = vld [vmem:[%s1 + $0x10] sm:$0xff]
  %v68 = vld [vmem:[%s1 + $0x18] sm:$0xff]
  %v69 = vld [vmem:[%s1 + $0x20] sm:$0xff]
  %v70 = vld [vmem:[%s1 + $0x28] sm:$0xff]
  %v71 = vld [vmem:[%s1 + $0x30] sm:$0xff]
  %v72 = vld [vmem:[%s1 + $0x38] sm:$0xff]
  %v73 = vld [vmem:[%s1 + $0x40] sm:$0xff]
  %v74 = vld [vmem:[%s1 + $0x48] sm:$0xff]
  %v75 = vld [vmem:[%s1 + $0x50] sm:$0xff]
  %v76 = vld [vmem:[%s1 + $0x58] sm:$0xff]
  %v77 = vld [vmem:[%s1 + $0x60] sm:$0xff]
  %v78 = vld [vmem:[%s1 + $0x68] sm:$0xff]
  %v79 = vld [vmem:[%s1 + $0x70] sm:$0xff]
  %v80 = vld [vmem:[%s1 + $0x78] sm:$0xff]
  %v81 = vpack.c.bf16 %v64, %v63
  %v82 = vpack.c.bf16 %v66, %v65
  %v83 = vpack.c.bf16 %v68, %v67
  %v84 = vpack.c.bf16 %v70, %v69
  %v85 = vpack.c.bf16 %v72, %v71
  %v86 = vpack.c.bf16 %v74, %v73
  %v87 = vpack.c.bf16 %v76, %v75
  %v88 = vpack.c.bf16 %v78, %v77
  %v89 = vpack.c.bf16 %v80, %v79
  %v90 = vld [vmem:[%s48] sm:$0xff]
  %v91 = vld [vmem:[%s48 + $0x8] sm:$0xff]
  %v92 = vld [vmem:[%s55] sm:$0xff]
  %v93 = vld [vmem:[%s55 + $0x8] sm:$0xff]
  %v94 = vpack.c.bf16 %v91, %v90
  %v95 = vpack.c.bf16 %v93, %v92
  %vm96 = vcmask 130048
  %v98 = vsel %vm96, %v81, 0
  %100 = vmatpush.bf16.msra.mxu0 0
  %101 = vmatpush.bf16.msra.mxu0 0
  %102 = vmatpush.bf16.msra.mxu0 0
  %103 = vmatpush.bf16.msra.mxu0 0
  %104 = vmatpush.bf16.msra.mxu0 0
  %105 = vmatpush.bf16.msra.mxu0 0
  %106 = vmatpush.bf16.msra.mxu0 0
  %107 = vmatpush.bf16.msra.mxu0 %v94
  %108 = vmatmul.bf16.gmra.mxu0 %v98
  %v109 = vpop.f32.mrf.mxu0
  %v110 = vadd.f32 0.0, %v109
  %v111 = vpop.f32.mrf.mxu0
  %v112 = vadd.f32 0.0, %v111
  %113 = vdwg.mxu0
  %114 = vmatpush.bf16.msra.mxu0 0
  %115 = vmatpush.bf16.msra.mxu0 0
  %116 = vmatpush.bf16.msra.mxu0 0
  %117 = vmatpush.bf16.msra.mxu0 0
  %118 = vmatpush.bf16.msra.mxu0 0
  %119 = vmatpush.bf16.msra.mxu0 0
  %120 = vmatpush.bf16.msra.mxu0 0
  %121 = vmatpush.bf16.msra.mxu0 %v95
  %122 = vmatmul.bf16.gmra.mxu0 %v98
  %v123 = vpop.f32.mrf.mxu0
  %v124 = vadd.f32 0.0, %v123
  %v125 = vpop.f32.mrf.mxu0
  %v126 = vadd.f32 0.0, %v125
  %127 = vdwg.mxu0
  %v128 = vmul.f32 %v90, %v90
  %v129 = vmul.f32 %v91, %v91
  %v130 = vmul.f32 %v92, %v92
  %v131 = vmul.f32 %v93, %v93
  %v132 = vmul.f32 %v90, %v92
  %v133 = vmul.f32 %v91, %v93
  %v135 = vsel %vm96, %v63, 0
  %v138 = vsel %vm96, %v64, 0
  %140 = vmatpush.msra.mxu0 0.0
  %141 = vmatpush.msra.mxu0 0.0
  %142 = vmatpush.msra.mxu0 0.0
  %143 = vmatpush.msra.mxu0 0.0
  %144 = vmatpush.msra.mxu0 0.0
  %145 = vmatpush.msra.mxu0 0.0
  %146 = vmatpush.msra.mxu0 0.0
  %147 = vmatpush.msra.mxu0 0.0
  %148 = vmatpush.msra.mxu0 0.0
  %149 = vmatpush.msra.mxu0 0.0
  %150 = vmatpush.msra.mxu0 0.0
  %151 = vmatpush.msra.mxu0 0.0
  %152 = vmatpush.msra.mxu0 0.0
  %153 = vmatpush.msra.mxu0 0.0
  %154 = vmatpush.msra.mxu0 %v129
  %155 = vmatpush.msra.mxu0 %v128
  %156 = vmatmul.f32.gmra.mxu0 %v135
  %v157 = vpop.f32.mrf.mxu0
  %v158 = vadd.f32 0.0, %v157
  %159 = vmatmul.f32.gmra.mxu0 %v138
  %v160 = vpop.f32.mrf.mxu0
  %v161 = vadd.f32 0.0, %v160
  %162 = vdwg.mxu0
  %163 = vmatpush.msra.mxu0 0.0
  %164 = vmatpush.msra.mxu0 0.0
  %165 = vmatpush.msra.mxu0 0.0
  %166 = vmatpush.msra.mxu0 0.0
  %167 = vmatpush.msra.mxu0 0.0
  %168 = vmatpush.msra.mxu0 0.0
  %169 = vmatpush.msra.mxu0 0.0
  %170 = vmatpush.msra.mxu0 0.0
  %171 = vmatpush.msra.mxu0 0.0
  %172 = vmatpush.msra.mxu0 0.0
  %173 = vmatpush.msra.mxu0 0.0
  %174 = vmatpush.msra.mxu0 0.0
  %175 = vmatpush.msra.mxu0 0.0
  %176 = vmatpush.msra.mxu0 0.0
  %177 = vmatpush.msra.mxu0 %v131
  %178 = vmatpush.msra.mxu0 %v130
  %179 = vmatmul.f32.gmra.mxu0 %v135
  %v180 = vpop.f32.mrf.mxu0
  %v181 = vadd.f32 0.0, %v180
  %182 = vmatmul.f32.gmra.mxu0 %v138
  %v183 = vpop.f32.mrf.mxu0
  %v184 = vadd.f32 0.0, %v183
  %185 = vdwg.mxu0
  %186 = vmatpush.msra.mxu0 0.0
  %187 = vmatpush.msra.mxu0 0.0
  %188 = vmatpush.msra.mxu0 0.0
  %189 = vmatpush.msra.mxu0 0.0
  %190 = vmatpush.msra.mxu0 0.0
  %191 = vmatpush.msra.mxu0 0.0
  %192 = vmatpush.msra.mxu0 0.0
  %193 = vmatpush.msra.mxu0 0.0
  %194 = vmatpush.msra.mxu0 0.0
  %195 = vmatpush.msra.mxu0 0.0
  %196 = vmatpush.msra.mxu0 0.0
  %197 = vmatpush.msra.mxu0 0.0
  %198 = vmatpush.msra.mxu0 0.0
  %199 = vmatpush.msra.mxu0 0.0
  %200 = vmatpush.msra.mxu0 %v133
  %201 = vmatpush.msra.mxu0 %v132
  %202 = vmatmul.f32.gmra.mxu0 %v135
  %v203 = vpop.f32.mrf.mxu0
  %v204 = vadd.f32 0.0, %v203
  %205 = vmatmul.f32.gmra.mxu0 %v138
  %v206 = vpop.f32.mrf.mxu0
  %v207 = vadd.f32 0.0, %v206
  %208 = vdwg.mxu0
  %v209 = vpack.c.bf16 %v112, %v110
  %v210 = vpack.c.bf16 %v126, %v124
  %211 = vmatpush.bf16.msra.mxu0 %v89
  %212 = vmatpush.bf16.msra.mxu0 %v88
  %213 = vmatpush.bf16.msra.mxu0 %v87
  %214 = vmatpush.bf16.msra.mxu0 %v86
  %215 = vmatpush.bf16.msra.mxu0 %v85
  %216 = vmatpush.bf16.msra.mxu0 %v84
  %217 = vmatpush.bf16.msra.mxu0 %v83
  %218 = vmatpush.bf16.msra.mxu0 %v82
  %219 = vmatmul.bf16.gmra.mxu0 %v209
  %v220 = vpop.f32.mrf.mxu0
  %v221 = vadd.f32 0.0, %v220
  %v222 = vpop.f32.mrf.mxu0
  %v223 = vadd.f32 0.0, %v222
  %224 = vmatmul.bf16.gmra.mxu0 %v210
  %v225 = vpop.f32.mrf.mxu0
  %v226 = vadd.f32 0.0, %v225
  %v227 = vpop.f32.mrf.mxu0
  %v228 = vadd.f32 0.0, %v227
  %229 = vdwg.mxu0
  %230 = vmatpush.msra.mxu0 %v80
  %231 = vmatpush.msra.mxu0 %v79
  %232 = vmatpush.msra.mxu0 %v78
  %233 = vmatpush.msra.mxu0 %v77
  %234 = vmatpush.msra.mxu0 %v76
  %235 = vmatpush.msra.mxu0 %v75
  %236 = vmatpush.msra.mxu0 %v74
  %237 = vmatpush.msra.mxu0 %v73
  %238 = vmatpush.msra.mxu0 %v72
  %239 = vmatpush.msra.mxu0 %v71
  %240 = vmatpush.msra.mxu0 %v70
  %241 = vmatpush.msra.mxu0 %v69
  %242 = vmatpush.msra.mxu0 %v68
  %243 = vmatpush.msra.mxu0 %v67
  %244 = vmatpush.msra.mxu0 %v66
  %245 = vmatpush.msra.mxu0 %v65
  %246 = vmatmul.f32.gmra.mxu0 %v158
  %v247 = vpop.f32.mrf.mxu0
  %v248 = vadd.f32 0.0, %v247
  %249 = vmatmul.f32.gmra.mxu0 %v161
  %v250 = vpop.f32.mrf.mxu0
  %v251 = vadd.f32 0.0, %v250
  %252 = vmatmul.f32.gmra.mxu0 %v181
  %v253 = vpop.f32.mrf.mxu0
  %v254 = vadd.f32 0.0, %v253
  %255 = vmatmul.f32.gmra.mxu0 %v184
  %v256 = vpop.f32.mrf.mxu0
  %v257 = vadd.f32 0.0, %v256
  %258 = vmatmul.f32.gmra.mxu0 %v204
  %v259 = vpop.f32.mrf.mxu0
  %v260 = vadd.f32 0.0, %v259
  %261 = vmatmul.f32.gmra.mxu0 %v207
  %v262 = vpop.f32.mrf.mxu0
  %v263 = vadd.f32 0.0, %v262
  %264 = vdwg.mxu0
  %v265 = vmul.f32 %v221, %v221
  %v266 = vmul.f32 %v223, %v223
  %v267 = vmul.f32 %v226, %v226
  %v268 = vmul.f32 %v228, %v228
  %v269 = vmul.f32 %v221, %v226
  %v270 = vmul.f32 %v223, %v228
  %v271 = vsub.f32 %v248, %v265
  %v272 = vsub.f32 %v251, %v266
  %v273 = vsub.f32 %v254, %v267
  %v274 = vsub.f32 %v257, %v268
  %v275 = vsub.f32 %v260, %v269
  %v276 = vsub.f32 %v263, %v270
  %v277 = vmul.f32 %v269, 2.0
  %v278 = vmul.f32 %v270, 2.0
  %v279 = vadd.f32 %v277, 0.0001
  %v280 = vadd.f32 %v278, 0.0001
  %v281 = vmul.f32 %v275, 2.0
  %v282 = vmul.f32 %v276, 2.0
  %v283 = vadd.f32 %v281, 0.0009
  %v284 = vadd.f32 %v282, 0.0009
  %v285 = vmul.f32 %v279, %v283
  %v286 = vmul.f32 %v280, %v284
  %v287 = vadd.f32 %v265, %v267
  %v288 = vadd.f32 %v266, %v268
  %v289 = vadd.f32 %v287, 0.0001
  %v290 = vadd.f32 %v288, 0.0001
  %v291 = vadd.f32 %v271, %v273
  %v292 = vadd.f32 %v272, %v274
  %v293 = vadd.f32 %v291, 0.0009
  %v294 = vadd.f32 %v292, 0.0009
  %v295 = vmul.f32 %v289, %v293
  %v296 = vmul.f32 %v290, %v294
  %v297 = vrcp.pop %v295
  %v298 = vrcp.pop %v296
  %v299 = vmul.f32 %v285, %v297
  %v300 = vmul.f32 %v286, %v298
  %v301 = vld [vmem:[%s4] sm:$0xff]
  %v302 = vadd.f32 %v299, %v300
  %v303 = vadd.f32 %v301, %v302
  %304 = vst [vmem:[%s4] sm:$0xff] %v303
  // Predicated region
  $region22: #{dssim_loss.1} parent=0 // pred_check
    _
  $region23: #{dssim_loss.1} parent=0 // pred_check_branch
    %306 = sbr.rel (0) target = $region25
  $region24: #{dssim_loss.1} parent=0 // pred_region
    _
  $region25: #{dssim_loss.1} parent=0 // pred_fallthru
    _
  // Predicated region
  $region26: #{dssim_loss.1} parent=0 // pred_check
    _
  $region27: #{dssim_loss.1} parent=0 // pred_check_branch
    %308 = sbr.rel (0) target = $region29
  $region28: #{dssim_loss.1} parent=0 // pred_region
    _
  $region29: #{dssim_loss.1} parent=0 // pred_fallthru
    _

</llo_original>
